<compile_context>
chip_gen: v7x
topology: tpu7x:2x2x1
jax: 0.10.0
libtpu: 0.0.40
codegen_flags: <defaults>
</compile_context>

<pallas_src>
import functools

import jax
import jax.numpy as jnp
from jax.experimental import pallas as pl
from jax.experimental.pallas import tpu as pltpu


# ----------------------------- Pallas kernel ------------------------------ #
def _grouping_mlp_kernel(num_layers, nsample, x_ref, *refs):
    """One grid step over `tile_groups` point-groups (tile_groups * nsample rows).

    x_ref : (tile_groups * nsample, C_in)   channel-minor input rows
    refs  : num_layers * (w_ref, b_ref), out_ref
            w : (C_in_i, C_out_i)  Conv2d(k=1) weight with BN scale folded (bf16)
            b : (1, C_out_i)       conv bias + BN shift folded (f32)
    out_ref: (tile_groups // k_pack, k_pack * C_last)  lane-dense packed max-pool
    """
    out_ref = refs[-1]
    param_refs = refs[:-1]

    h = x_ref[...].astype(jnp.float32)                       # (rows, C_in)
    for i in range(num_layers):
        w = param_refs[2 * i][...]
        b = param_refs[2 * i + 1][...]
        # Conv2d(kernel_size=1) over channels == per-row matmul on the MXU.
        # Operands cast to the (bf16) weight dtype; accumulation stays f32.
        h = jnp.dot(h.astype(w.dtype), w, preferred_element_type=jnp.float32)
        h = jnp.maximum(h + b, 0.0)                          # bias + ReLU in f32 (VPU)

    rows, c_last = h.shape
    tile_groups = rows // nsample
    # Rows are (group, sample)-ordered; pool over the sample axis (XLU reduce).
    pooled = jnp.max(h.reshape(tile_groups, nsample, c_last), axis=1)
    # Lane-dense store: pack k consecutive groups into one 128-lane-wide row.
    # Row-major bytes are identical to the (G, c_last) layout, so the host-side
    # reshape back to (B, npoint, c_last) is unchanged.
    out_ref[...] = pooled.reshape(out_ref.shape).astype(out_ref.dtype)


# ---------------------------- sizing helpers ------------------------------ #
def _padded_row_bytes(c, itemsize):
    """VMEM bytes of one row of a (rows, c) tile: lanes pad up to a multiple of 128."""
    return -(-max(int(c), 1) // 128) * 128 * itemsize


def _device_budget():
    """Per-TPU-generation (vmem_limit_bytes, default rows-per-tile)."""
    vmem_phys = 64 * 1024 * 1024                    # conservative: v7x per-core VMEM
    try:
        info = pltpu.get_tpu_info()
        vmem_phys = int(getattr(info, "vmem_capacity_bytes", vmem_phys))
    except Exception:
        pass
    if vmem_phys >= 96 * 1024 * 1024:               # v5e / v6e: 128 MiB physical VMEM
        return 80 * 1024 * 1024, 16384
    return 48 * 1024 * 1024, 8192                   # v7x: 64 MiB per TensorCore


def _choose_tile_groups(G, S, align, target_rows):
    """Groups per grid step: ~target_rows rows, a multiple of `align`, and (when
    possible) <= ceil(G/2) so the grid has >= 2 steps for v7x's two TensorCores."""
    if G <= align:
        return G                                    # single full-array block
    tg = max(align, (max(1, target_rows // S) // align) * align)
    half = ((G + 1) // 2) // align * align          # largest aligned tg giving grid >= 2
    if align <= half:
        tg = min(tg, half)
    return G if tg >= G else tg


# ------------------------------ host wrapper ------------------------------ #
def grouping_mlp_forward(points, params, target_rows=None):
    """points: [B, npoint, nsample, C_in] f32 -> [B, npoint, C_last] f32."""
    B, N, S, C = points.shape
    G = B * N                                       # number of (batch, point) groups
    x = points.reshape(G * S, C)                    # free row-major flatten, no copy

    num_layers = len(params)
    c_last = int(params[-1][0].shape[1])
    widths = [int(C)] + [int(w.shape[1]) for (w, _) in params]

    # Lane-dense output packing: (G, c_last) -> (G // k, k * c_last), k*c_last % 128 == 0.
    k_pack = 1
    if c_last < 128 and 128 % c_last == 0 and G % (128 // c_last) == 0:
        k_pack = 128 // c_last
    align = 8 * k_pack                              # keeps out-block sublanes % 8 == 0

    # Per-generation VMEM budget; size the row tile from the lane-padded footprint.
    vmem_limit, default_rows = _device_budget()
    if target_rows is None:
        target_rows = default_rows
    per_row = (2 * _padded_row_bytes(C, 4)                          # double-buffered input
               + 2 * max(_padded_row_bytes(c, 4) for c in widths)   # f32 intermediates
               + max(_padded_row_bytes(c, 2) for c in widths))      # bf16 MXU operand copy
    weight_bytes = 2 * sum(int(w.size) * w.dtype.itemsize + int(b.size) * 4 + 1024
                           for (w, b) in params)
    rows_budget = max(align * S, (vmem_limit - weight_bytes - (2 << 20)) // per_row)
    target_rows = min(int(target_rows), int(rows_budget))

    tg = _choose_tile_groups(G, S, align, target_rows)
    grid = (pl.cdiv(G, tg),)                        # partial edge block handled by masking

    flat_params = []
    for (w, b) in params:
        flat_params += [w, b]

    kernel = functools.partial(_grouping_mlp_kernel, num_layers, S)
    cost = pl.CostEstimate(
        flops=2 * G * S * sum(int(w.shape[0]) * int(w.shape[1]) for (w, _) in params),
        transcendentals=0,
        bytes_accessed=int(x.size) * 4 + G * c_last * 4
        + sum(int(w.size) * w.dtype.itemsize + int(b.size) * 4 for (w, b) in params),
    )

    def _param_spec(shape, wb_mode):
        # Grid-invariant weight/bias block; single-buffered when wb_mode is given.
        if wb_mode is None:
            return pl.BlockSpec(shape, lambda i: (0, 0))
        return pl.BlockSpec(shape, lambda i: (0, 0), pipeline_mode=wb_mode)

    def _run(k, wb_mode):
        out_rows, out_cols = G // k, k * c_last
        in_specs = [pl.BlockSpec((tg * S, C), lambda i: (i, 0))]
        # TODO(synk): if profiling shows exposed input DMA, bump the input spec to
        #             pipeline_mode=pl.Buffered(3) (re-check the v7x VMEM budget first).
        for (w, b) in params:
            cin, cout = int(w.shape[0]), int(w.shape[1])
            in_specs.append(_param_spec((cin, cout), wb_mode))
            in_specs.append(_param_spec((1, cout), wb_mode))
        out = pl.pallas_call(
            kernel,
            out_shape=jax.ShapeDtypeStruct((out_rows, out_cols), jnp.float32),
            grid_spec=pltpu.PrefetchScalarGridSpec(
                num_scalar_prefetch=0,
                grid=grid,
                in_specs=in_specs,
                out_specs=pl.BlockSpec((tg // k, out_cols), lambda i: (i, 0)),
            ),
            compiler_params=pltpu.CompilerParams(
                dimension_semantics=("parallel",),
                vmem_limit_bytes=vmem_limit,
            ),
            cost_estimate=cost,
        )(x, *flat_params)
        return jax.block_until_ready(out)

    # Preferred config first; fall back to known-good layouts if this JAX/Mosaic
    # version rejects one of the optional features (single-buffered weights or the
    # packed lane-dense store).
    attempts = [(k_pack, pl.Buffered(1)), (k_pack, None)]
    if k_pack != 1:
        attempts.append((1, None))
    out, last_err = None, None
    for k, wb in attempts:
        try:
            out = _run(k, wb)
            break
        except Exception as err:                    # pragma: no cover - fallback path
            last_err = err
    if out is None:
        raise last_err

    return out.reshape(B, N, c_last)


# ------------------------ deterministic param init ------------------------ #
def init_params(key, in_channel, hidden_channels):
    """Raw Conv2d(k=1) weights + eval-mode BatchNorm2d parameters."""
    raw = []
    last = in_channel
    for out_ch in hidden_channels:
        key, kw, kb, kg, kbe, km, kv = jax.random.split(key, 7)
        raw.append(dict(
            w=0.1 * jax.random.normal(kw, (last, out_ch), jnp.float32),
            b=0.1 * jax.random.normal(kb, (out_ch,), jnp.float32),
            gamma=1.0 + 0.1 * jax.random.normal(kg, (out_ch,), jnp.float32),
            beta=0.1 * jax.random.normal(kbe, (out_ch,), jnp.float32),
            mean=0.1 * jax.random.normal(km, (out_ch,), jnp.float32),
            var=1.0 + 0.1 * jax.random.uniform(kv, (out_ch,), jnp.float32),
        ))
        last = out_ch
    return raw


def fold_params(raw, eps=1e-5, weight_dtype=jnp.bfloat16):
    """Fold eval-mode BN + conv bias into per-layer (w, b).

    Weights are pre-cast to `weight_dtype` (bf16 by default: MXU-native, halves the
    operand VMEM footprint). Pass jnp.float32 if full operand precision is required.
    """
    folded = []
    for p in raw:
        scale = p["gamma"] / jnp.sqrt(p["var"] + eps)          # (C_out,)
        shift = p["beta"] - p["mean"] * scale
        w = (p["w"] * scale[None, :]).astype(weight_dtype)     # (C_in, C_out)
        b = (p["b"] * scale + shift).reshape(1, -1).astype(jnp.float32)
        folded.append((w, b))
    return folded


# ------------------------------ JAX references ----------------------------- #
def ref_forward(points, raw_params, eps=1e-5):
    """f32 translation of the PyTorch forward (eval-mode BN)."""
    x = points.astype(jnp.float32)                             # [B, N, S, C]
    for p in raw_params:
        x = jnp.einsum("bnsc,co->bnso", x, p["w"]) + p["b"]
        x = (x - p["mean"]) * (p["gamma"] / jnp.sqrt(p["var"] + eps)) + p["beta"]
        x = jnp.maximum(x, 0.0)
    return jnp.max(x, axis=2)                                  # [B, N, C_last]


def folded_ref_forward(points, params):
    """Reference applying the exact folded (bf16) parameters the kernel consumes."""
    B, N, S, _ = points.shape
    h = points.reshape(B * N * S, -1).astype(jnp.float32)
    for (w, b) in params:
        h = jnp.dot(h.astype(w.dtype), w, preferred_element_type=jnp.float32) + b
        h = jnp.maximum(h, 0.0)
    c_last = h.shape[-1]
    return jnp.max(h.reshape(B * N, S, c_last), axis=1).reshape(B, N, c_last)


# ---------------------------------- main ----------------------------------- #
if __name__ == "__main__":
    key = jax.random.PRNGKey(0)
    kx, kp = jax.random.split(key)

    B, npoint, nsample, C_in = 2, 16, 8, 4
    hidden = [32, 32]

    points = jax.random.normal(kx, (B, npoint, nsample, C_in), jnp.float32)
    raw = init_params(kp, C_in, hidden)
    params = fold_params(raw)                      # BN folded, weights bf16

    out = grouping_mlp_forward(points, params)
    out = jax.block_until_ready(out)
    assert out.shape == (B, npoint, hidden[-1])

    # Exact check against a reference using identical folding / bf16 dot operands.
    ref_bf16 = folded_ref_forward(points, params)
    assert jnp.allclose(out, ref_bf16, atol=1e-3, rtol=1e-3), \
        float(jnp.max(jnp.abs(out - ref_bf16)))

    # Semantic check against the full-f32 PyTorch-style forward (bf16 MXU operands
    # introduce <~1% relative error, hence the looser tolerance).
    ref_f32 = ref_forward(points, raw)
    assert jnp.allclose(out, ref_f32, atol=3e-2, rtol=3e-2), \
        float(jnp.max(jnp.abs(out - ref_f32)))

    print("KERNEL_OK")
</pallas_src>

<mosaic_0001>
module attributes {stable_mosaic.version = 11 : i64} {
  func.func @_grouping_mlp_kernel(%arg0: i32, %arg1: memref<256x4xf32, #tpu.memory_space<vmem>>, %arg2: memref<4x32xbf16, #tpu.memory_space<vmem>>, %arg3: memref<1x32xf32, #tpu.memory_space<vmem>>, %arg4: memref<32x32xbf16, #tpu.memory_space<vmem>>, %arg5: memref<1x32xf32, #tpu.memory_space<vmem>>, %arg6: memref<8x128xf32, #tpu.memory_space<vmem>>) attributes {dimension_semantics = [#tpu.dimension_semantics<parallel>], iteration_bounds = array<i64: 1>, scalar_prefetch = 0 : i64, scratch_operands = 0 : i64, tpu.core_type = #tpu.core_type<tc>, window_params = [{transform_indices = @transform_0, window_bounds = array<i64: 256, 4>}, {pipeline_mode = #tpu.pipeline_mode<synchronous>, transform_indices = @transform_1, window_bounds = array<i64: 4, 32>}, {pipeline_mode = #tpu.pipeline_mode<synchronous>, transform_indices = @transform_2, window_bounds = array<i64: 1, 32>}, {pipeline_mode = #tpu.pipeline_mode<synchronous>, transform_indices = @transform_3, window_bounds = array<i64: 32, 32>}, {pipeline_mode = #tpu.pipeline_mode<synchronous>, transform_indices = @transform_4, window_bounds = array<i64: 1, 32>}, {transform_indices = @transform_5, window_bounds = array<i64: 8, 128>}]} {
    %c0 = arith.constant 0 : index
    %c0_0 = arith.constant 0 : index
    %0 = vector.load %arg1[%c0, %c0_0] : memref<256x4xf32, #tpu.memory_space<vmem>>, vector<256x4xf32>
    %c0_1 = arith.constant 0 : index
    %c0_2 = arith.constant 0 : index
    %1 = vector.load %arg2[%c0_1, %c0_2] : memref<4x32xbf16, #tpu.memory_space<vmem>>, vector<4x32xbf16>
    %c0_3 = arith.constant 0 : index
    %c0_4 = arith.constant 0 : index
    %2 = vector.load %arg3[%c0_3, %c0_4] : memref<1x32xf32, #tpu.memory_space<vmem>>, vector<1x32xf32>
    %3 = arith.truncf %0 : vector<256x4xf32> to vector<256x4xbf16>
    %cst = arith.constant dense<0.000000e+00> : vector<256x32xf32>
    %4 = tpu.matmul %3, %1, %cst {dimension_numbers = #tpu.dot_dimension_numbers<[1], [0], [0], [1], [0, 0, 1, 1], [], []>} : vector<256x4xbf16>, vector<4x32xbf16>, vector<256x32xf32> -> vector<256x32xf32>
    %5 = vector.broadcast %2 : vector<1x32xf32> to vector<256x32xf32>
    %6 = arith.addf %4, %5 : vector<256x32xf32>
    %cst_5 = arith.constant 0.000000e+00 : f32
    %7 = vector.broadcast %cst_5 : f32 to vector<256x32xf32>
    %8 = arith.maximumf %6, %7 : vector<256x32xf32>
    %c0_6 = arith.constant 0 : index
    %c0_7 = arith.constant 0 : index
    %9 = vector.load %arg4[%c0_6, %c0_7] : memref<32x32xbf16, #tpu.memory_space<vmem>>, vector<32x32xbf16>
    %c0_8 = arith.constant 0 : index
    %c0_9 = arith.constant 0 : index
    %10 = vector.load %arg5[%c0_8, %c0_9] : memref<1x32xf32, #tpu.memory_space<vmem>>, vector<1x32xf32>
    %11 = arith.truncf %8 : vector<256x32xf32> to vector<256x32xbf16>
    %cst_10 = arith.constant dense<0.000000e+00> : vector<256x32xf32>
    %12 = tpu.matmul %11, %9, %cst_10 {dimension_numbers = #tpu.dot_dimension_numbers<[1], [0], [0], [1], [0, 0, 1, 1], [], []>} : vector<256x32xbf16>, vector<32x32xbf16>, vector<256x32xf32> -> vector<256x32xf32>
    %13 = vector.broadcast %10 : vector<1x32xf32> to vector<256x32xf32>
    %14 = arith.addf %12, %13 : vector<256x32xf32>
    %cst_11 = arith.constant 0.000000e+00 : f32
    %15 = vector.broadcast %cst_11 : f32 to vector<256x32xf32>
    %16 = arith.maximumf %14, %15 : vector<256x32xf32>
    %17 = vector.shape_cast %16 : vector<256x32xf32> to vector<32x8x32xf32>
    %cst_12 = arith.constant dense<0xFF800000> : vector<32x32xf32>
    %18 = vector.multi_reduction <maximumf>, %17, %cst_12 [1] : vector<32x8x32xf32> to vector<32x32xf32>
    %19 = vector.shape_cast %18 : vector<32x32xf32> to vector<8x128xf32>
    %c0_13 = arith.constant 0 : index
    %c0_14 = arith.constant 0 : index
    %20 = vector.load %arg6[%c0_13, %c0_14] : memref<8x128xf32, #tpu.memory_space<vmem>>, vector<8x128xf32>
    tpu.vector_store %arg6[%c0_13, %c0_14], %19 {strides = array<i32>} : memref<8x128xf32, #tpu.memory_space<vmem>>, vector<8x128xf32>,
    return
  }
  func.func @transform_0(%arg0: i32) -> (i32, i32) {
    %c0_i32 = arith.constant 0 : i32
    %c0_i32_0 = arith.constant 0 : i32
    return %arg0, %c0_i32 : i32, i32
  }
  func.func @transform_1(%arg0: i32) -> (i32, i32) {
    %c0_i32 = arith.constant 0 : i32
    %c0_i32_0 = arith.constant 0 : i32
    %c0_i32_1 = arith.constant 0 : i32
    return %c0_i32, %c0_i32_0 : i32, i32
  }
  func.func @transform_2(%arg0: i32) -> (i32, i32) {
    %c0_i32 = arith.constant 0 : i32
    %c0_i32_0 = arith.constant 0 : i32
    %c0_i32_1 = arith.constant 0 : i32
    return %c0_i32, %c0_i32_0 : i32, i32
  }
  func.func @transform_3(%arg0: i32) -> (i32, i32) {
    %c0_i32 = arith.constant 0 : i32
    %c0_i32_0 = arith.constant 0 : i32
    %c0_i32_1 = arith.constant 0 : i32
    return %c0_i32, %c0_i32_0 : i32, i32
  }
  func.func @transform_4(%arg0: i32) -> (i32, i32) {
    %c0_i32 = arith.constant 0 : i32
    %c0_i32_0 = arith.constant 0 : i32
    %c0_i32_1 = arith.constant 0 : i32
    return %c0_i32, %c0_i32_0 : i32, i32
  }
  func.func @transform_5(%arg0: i32) -> (i32, i32) {
    %c0_i32 = arith.constant 0 : i32
    %c0_i32_0 = arith.constant 0 : i32
    return %arg0, %c0_i32 : i32, i32
  }
}

module attributes {stable_mosaic.version = 11 : i64} {
  func.func @_grouping_mlp_kernel(%arg0: i32, %arg1: memref<256x4xf32, #tpu.memory_space<vmem>>, %arg2: memref<4x32xbf16, #tpu.memory_space<vmem>>, %arg3: memref<1x32xf32, #tpu.memory_space<vmem>>, %arg4: memref<32x32xbf16, #tpu.memory_space<vmem>>, %arg5: memref<1x32xf32, #tpu.memory_space<vmem>>, %arg6: memref<8x128xf32, #tpu.memory_space<vmem>>) attributes {dimension_semantics = [#tpu.dimension_semantics<parallel>], iteration_bounds = array<i64: 1>, scalar_prefetch = 0 : i64, scratch_operands = 0 : i64, tpu.core_type = #tpu.core_type<tc>, window_params = [{transform_indices = @transform_0, window_bounds = array<i64: 256, 4>}, {pipeline_mode = #tpu.pipeline_mode<synchronous>, transform_indices = @transform_1, window_bounds = array<i64: 4, 32>}, {pipeline_mode = #tpu.pipeline_mode<synchronous>, transform_indices = @transform_2, window_bounds = array<i64: 1, 32>}, {pipeline_mode = #tpu.pipeline_mode<synchronous>, transform_indices = @transform_3, window_bounds = array<i64: 32, 32>}, {pipeline_mode = #tpu.pipeline_mode<synchronous>, transform_indices = @transform_4, window_bounds = array<i64: 1, 32>}, {transform_indices = @transform_5, window_bounds = array<i64: 8, 128>}]} {
    %c0 = arith.constant 0 : index
    %c0_0 = arith.constant 0 : index
    %0 = vector.load %arg1[%c0, %c0_0] : memref<256x4xf32, #tpu.memory_space<vmem>>, vector<256x4xf32>
    %c0_1 = arith.constant 0 : index
    %c0_2 = arith.constant 0 : index
    %1 = vector.load %arg2[%c0_1, %c0_2] : memref<4x32xbf16, #tpu.memory_space<vmem>>, vector<4x32xbf16>
    %c0_3 = arith.constant 0 : index
    %c0_4 = arith.constant 0 : index
    %2 = vector.load %arg3[%c0_3, %c0_4] : memref<1x32xf32, #tpu.memory_space<vmem>>, vector<1x32xf32>
    %3 = arith.truncf %0 : vector<256x4xf32> to vector<256x4xbf16>
    %cst = arith.constant dense<0.000000e+00> : vector<256x32xf32>
    %4 = tpu.matmul %3, %1, %cst {dimension_numbers = #tpu.dot_dimension_numbers<[1], [0], [0], [1], [0, 0, 1, 1], [], []>} : vector<256x4xbf16>, vector<4x32xbf16>, vector<256x32xf32> -> vector<256x32xf32>
    %5 = vector.broadcast %2 : vector<1x32xf32> to vector<256x32xf32>
    %6 = arith.addf %4, %5 : vector<256x32xf32>
    %cst_5 = arith.constant 0.000000e+00 : f32
    %7 = vector.broadcast %cst_5 : f32 to vector<256x32xf32>
    %8 = arith.maximumf %6, %7 : vector<256x32xf32>
    %c0_6 = arith.constant 0 : index
    %c0_7 = arith.constant 0 : index
    %9 = vector.load %arg4[%c0_6, %c0_7] : memref<32x32xbf16, #tpu.memory_space<vmem>>, vector<32x32xbf16>
    %c0_8 = arith.constant 0 : index
    %c0_9 = arith.constant 0 : index
    %10 = vector.load %arg5[%c0_8, %c0_9] : memref<1x32xf32, #tpu.memory_space<vmem>>, vector<1x32xf32>
    %11 = arith.truncf %8 : vector<256x32xf32> to vector<256x32xbf16>
    %cst_10 = arith.constant dense<0.000000e+00> : vector<256x32xf32>
    %12 = tpu.matmul %11, %9, %cst_10 {dimension_numbers = #tpu.dot_dimension_numbers<[1], [0], [0], [1], [0, 0, 1, 1], [], []>} : vector<256x32xbf16>, vector<32x32xbf16>, vector<256x32xf32> -> vector<256x32xf32>
    %13 = vector.broadcast %10 : vector<1x32xf32> to vector<256x32xf32>
    %14 = arith.addf %12, %13 : vector<256x32xf32>
    %cst_11 = arith.constant 0.000000e+00 : f32
    %15 = vector.broadcast %cst_11 : f32 to vector<256x32xf32>
    %16 = arith.maximumf %14, %15 : vector<256x32xf32>
    %17 = vector.shape_cast %16 : vector<256x32xf32> to vector<32x8x32xf32>
    %cst_12 = arith.constant dense<0xFF800000> : vector<32x32xf32>
    %18 = vector.multi_reduction <maximumf>, %17, %cst_12 [1] : vector<32x8x32xf32> to vector<32x32xf32>
    %19 = vector.shape_cast %18 : vector<32x32xf32> to vector<8x128xf32>
    %c0_13 = arith.constant 0 : index
    %c0_14 = arith.constant 0 : index
    %20 = vector.load %arg6[%c0_13, %c0_14] : memref<8x128xf32, #tpu.memory_space<vmem>>, vector<8x128xf32>
    tpu.vector_store %arg6[%c0_13, %c0_14], %19 {strides = array<i32>} : memref<8x128xf32, #tpu.memory_space<vmem>>, vector<8x128xf32>,
    return
  }
  func.func @transform_0(%arg0: i32) -> (i32, i32) {
    %c0_i32 = arith.constant 0 : i32
    %c0_i32_0 = arith.constant 0 : i32
    return %arg0, %c0_i32 : i32, i32
  }
  func.func @transform_1(%arg0: i32) -> (i32, i32) {
    %c0_i32 = arith.constant 0 : i32
    %c0_i32_0 = arith.constant 0 : i32
    %c0_i32_1 = arith.constant 0 : i32
    return %c0_i32, %c0_i32_0 : i32, i32
  }
  func.func @transform_2(%arg0: i32) -> (i32, i32) {
    %c0_i32 = arith.constant 0 : i32
    %c0_i32_0 = arith.constant 0 : i32
    %c0_i32_1 = arith.constant 0 : i32
    return %c0_i32, %c0_i32_0 : i32, i32
  }
  func.func @transform_3(%arg0: i32) -> (i32, i32) {
    %c0_i32 = arith.constant 0 : i32
    %c0_i32_0 = arith.constant 0 : i32
    %c0_i32_1 = arith.constant 0 : i32
    return %c0_i32, %c0_i32_0 : i32, i32
  }
  func.func @transform_4(%arg0: i32) -> (i32, i32) {
    %c0_i32 = arith.constant 0 : i32
    %c0_i32_0 = arith.constant 0 : i32
    %c0_i32_1 = arith.constant 0 : i32
    return %c0_i32, %c0_i32_0 : i32, i32
  }
  func.func @transform_5(%arg0: i32) -> (i32, i32) {
    %c0_i32 = arith.constant 0 : i32
    %c0_i32_0 = arith.constant 0 : i32
    return %arg0, %c0_i32 : i32, i32
  }
}

module attributes {stable_mosaic.version = 11 : i64} {
  func.func @_grouping_mlp_kernel(%arg0: i32, %arg1: memref<256x4xf32, #tpu.memory_space<vmem>>, %arg2: memref<4x32xbf16, #tpu.memory_space<vmem>>, %arg3: memref<1x32xf32, #tpu.memory_space<vmem>>, %arg4: memref<32x32xbf16, #tpu.memory_space<vmem>>, %arg5: memref<1x32xf32, #tpu.memory_space<vmem>>, %arg6: memref<32x32xf32, #tpu.memory_space<vmem>>) attributes {dimension_semantics = [#tpu.dimension_semantics<parallel>], iteration_bounds = array<i64: 1>, scalar_prefetch = 0 : i64, scratch_operands = 0 : i64, tpu.core_type = #tpu.core_type<tc>, window_params = [{transform_indices = @transform_0, window_bounds = array<i64: 256, 4>}, {pipeline_mode = #tpu.pipeline_mode<synchronous>, transform_indices = @transform_1, window_bounds = array<i64: 4, 32>}, {pipeline_mode = #tpu.pipeline_mode<synchronous>, transform_indices = @transform_2, window_bounds = array<i64: 1, 32>}, {pipeline_mode = #tpu.pipeline_mode<synchronous>, transform_indices = @transform_3, window_bounds = array<i64: 32, 32>}, {pipeline_mode = #tpu.pipeline_mode<synchronous>, transform_indices = @transform_4, window_bounds = array<i64: 1, 32>}, {transform_indices = @transform_5, window_bounds = array<i64: 32, 32>}]} {
    %c0 = arith.constant 0 : index
    %c0_0 = arith.constant 0 : index
    %0 = vector.load %arg1[%c0, %c0_0] : memref<256x4xf32, #tpu.memory_space<vmem>>, vector<256x4xf32>
    %c0_1 = arith.constant 0 : index
    %c0_2 = arith.constant 0 : index
    %1 = vector.load %arg2[%c0_1, %c0_2] : memref<4x32xbf16, #tpu.memory_space<vmem>>, vector<4x32xbf16>
    %c0_3 = arith.constant 0 : index
    %c0_4 = arith.constant 0 : index
    %2 = vector.load %arg3[%c0_3, %c0_4] : memref<1x32xf32, #tpu.memory_space<vmem>>, vector<1x32xf32>
    %3 = arith.truncf %0 : vector<256x4xf32> to vector<256x4xbf16>
    %cst = arith.constant dense<0.000000e+00> : vector<256x32xf32>
    %4 = tpu.matmul %3, %1, %cst {dimension_numbers = #tpu.dot_dimension_numbers<[1], [0], [0], [1], [0, 0, 1, 1], [], []>} : vector<256x4xbf16>, vector<4x32xbf16>, vector<256x32xf32> -> vector<256x32xf32>
    %5 = vector.broadcast %2 : vector<1x32xf32> to vector<256x32xf32>
    %6 = arith.addf %4, %5 : vector<256x32xf32>
    %cst_5 = arith.constant 0.000000e+00 : f32
    %7 = vector.broadcast %cst_5 : f32 to vector<256x32xf32>
    %8 = arith.maximumf %6, %7 : vector<256x32xf32>
    %c0_6 = arith.constant 0 : index
    %c0_7 = arith.constant 0 : index
    %9 = vector.load %arg4[%c0_6, %c0_7] : memref<32x32xbf16, #tpu.memory_space<vmem>>, vector<32x32xbf16>
    %c0_8 = arith.constant 0 : index
    %c0_9 = arith.constant 0 : index
    %10 = vector.load %arg5[%c0_8, %c0_9] : memref<1x32xf32, #tpu.memory_space<vmem>>, vector<1x32xf32>
    %11 = arith.truncf %8 : vector<256x32xf32> to vector<256x32xbf16>
    %cst_10 = arith.constant dense<0.000000e+00> : vector<256x32xf32>
    %12 = tpu.matmul %11, %9, %cst_10 {dimension_numbers = #tpu.dot_dimension_numbers<[1], [0], [0], [1], [0, 0, 1, 1], [], []>} : vector<256x32xbf16>, vector<32x32xbf16>, vector<256x32xf32> -> vector<256x32xf32>
    %13 = vector.broadcast %10 : vector<1x32xf32> to vector<256x32xf32>
    %14 = arith.addf %12, %13 : vector<256x32xf32>
    %cst_11 = arith.constant 0.000000e+00 : f32
    %15 = vector.broadcast %cst_11 : f32 to vector<256x32xf32>
    %16 = arith.maximumf %14, %15 : vector<256x32xf32>
    %17 = vector.shape_cast %16 : vector<256x32xf32> to vector<32x8x32xf32>
    %cst_12 = arith.constant dense<0xFF800000> : vector<32x32xf32>
    %18 = vector.multi_reduction <maximumf>, %17, %cst_12 [1] : vector<32x8x32xf32> to vector<32x32xf32>
    %c0_13 = arith.constant 0 : index
    %c0_14 = arith.constant 0 : index
    %19 = vector.load %arg6[%c0_13, %c0_14] : memref<32x32xf32, #tpu.memory_space<vmem>>, vector<32x32xf32>
    tpu.vector_store %arg6[%c0_13, %c0_14], %18 {strides = array<i32>} : memref<32x32xf32, #tpu.memory_space<vmem>>, vector<32x32xf32>,
    return
  }
  func.func @transform_0(%arg0: i32) -> (i32, i32) {
    %c0_i32 = arith.constant 0 : i32
    %c0_i32_0 = arith.constant 0 : i32
    return %arg0, %c0_i32 : i32, i32
  }
  func.func @transform_1(%arg0: i32) -> (i32, i32) {
    %c0_i32 = arith.constant 0 : i32
    %c0_i32_0 = arith.constant 0 : i32
    %c0_i32_1 = arith.constant 0 : i32
    return %c0_i32, %c0_i32_0 : i32, i32
  }
  func.func @transform_2(%arg0: i32) -> (i32, i32) {
    %c0_i32 = arith.constant 0 : i32
    %c0_i32_0 = arith.constant 0 : i32
    %c0_i32_1 = arith.constant 0 : i32
    return %c0_i32, %c0_i32_0 : i32, i32
  }
  func.func @transform_3(%arg0: i32) -> (i32, i32) {
    %c0_i32 = arith.constant 0 : i32
    %c0_i32_0 = arith.constant 0 : i32
    %c0_i32_1 = arith.constant 0 : i32
    return %c0_i32, %c0_i32_0 : i32, i32
  }
  func.func @transform_4(%arg0: i32) -> (i32, i32) {
    %c0_i32 = arith.constant 0 : i32
    %c0_i32_0 = arith.constant 0 : i32
    %c0_i32_1 = arith.constant 0 : i32
    return %c0_i32, %c0_i32_0 : i32, i32
  }
  func.func @transform_5(%arg0: i32) -> (i32, i32) {
    %c0_i32 = arith.constant 0 : i32
    %c0_i32_0 = arith.constant 0 : i32
    return %arg0, %c0_i32 : i32, i32
  }
}

</mosaic_0001>

<llo_original>
// kernel: tpu_custom_call.1
$region0: #{tpu_custom_call.1}
  #allocation0 [shape = 'u32[]', space=smem, size = 0x4, offset = 0x4, fixed_abs, tag = 'smem constant byte address 0x4 - core index']
  #allocation1 [shape = 'u32[144,128]{1,0:T(1,128)}', space=vmem, size = 0x12000, scoped, tag = 'internal scratch']
  %s0 = inlined_call_operand.vmem [shape: f32[256,4], index: 0, kind: input, shape index: {}]
  %s1 = inlined_call_operand.vmem [shape: bf16[4,32], index: 1, kind: input, shape index: {}]
  %s2 = inlined_call_operand.vmem [shape: f32[1,32], index: 2, kind: input, shape index: {}]
  %s3 = inlined_call_operand.vmem [shape: bf16[32,32], index: 3, kind: input, shape index: {}]
  %s4 = inlined_call_operand.vmem [shape: f32[1,32], index: 4, kind: input, shape index: {}]
  %s5 = inlined_call_operand.hbm [shape: f32[32,32], index: 5, kind: output, shape index: {}]
  %s6 = sld [smem:[#allocation0]]
  $region30: #{tpu_custom_call.1} parent=0
    _
  %s8 = ssub.s32 1, %s6
  %s9 = scalar_select 0, %s8, %s6
  $region1: #{tpu_custom_call.1} parent=0
    #allocation2 [shape = 'u8[16384]{0}', space=vmem, size = 0x4000, scoped, tag = 'output window, operand 0, single buffered']
    #allocation3 [shape = 's32[1]{0}', space=sflag, size = 0x4, scoped, tag = 'scoped memory for tpu_custom_call.1']
    %10 = vsyncpa [#allocation3], 0
    // Predicated region
    $region2: #{tpu_custom_call.1} parent=1 // pred_check
      _
    $region3: #{tpu_custom_call.1} parent=1 // pred_check_branch
      %12 = sbr.rel (0) target = $region5
    $region4: #{tpu_custom_call.1} parent=1 // pred_region
      _
    $region5: #{tpu_custom_call.1} parent=1 // pred_fallthru
      _
    // Predicated region
    $region6: #{tpu_custom_call.1} parent=1 // pred_check
      _
    $region7: #{tpu_custom_call.1} parent=1 // pred_check_branch
      %14 = sbr.rel (0) target = $region9
    $region8: #{tpu_custom_call.1} parent=1 // pred_region
      _
    $region9: #{tpu_custom_call.1} parent=1 // pred_fallthru
      _
    // Predicated region
    $region10: #{tpu_custom_call.1} parent=1 // pred_check
      _
    $region11: #{tpu_custom_call.1} parent=1 // pred_check_branch
      %16 = sbr.rel (0) target = $region13
    $region12: #{tpu_custom_call.1} parent=1 // pred_region
      _
    $region13: #{tpu_custom_call.1} parent=1 // pred_fallthru
      _
    // Predicated region
    $region14: #{tpu_custom_call.1} parent=1 // pred_check
      _
    $region15: #{tpu_custom_call.1} parent=1 // pred_check_branch
      %18 = sbr.rel (0) target = $region17
    $region16: #{tpu_custom_call.1} parent=1 // pred_region
      _
    $region17: #{tpu_custom_call.1} parent=1 // pred_fallthru
      _
    // Predicated region
    $region18: #{tpu_custom_call.1} parent=1 // pred_check
      _
    $region19: #{tpu_custom_call.1} parent=1 // pred_check_branch
      %20 = sbr.rel (0) target = $region21
    $region20: #{tpu_custom_call.1} parent=1 // pred_region
      _
    $region21: #{tpu_custom_call.1} parent=1 // pred_fallthru
      _
    %v22 = vld [vmem:[%s0] sm:$0xff]
    %v23 = vld [vmem:[%s0 + $0x8] sm:$0xff]
    %v24 = vld [vmem:[%s0 + $0x10] sm:$0xff]
    %v25 = vld [vmem:[%s0 + $0x18] sm:$0xff]
    %v26 = vld [vmem:[%s0 + $0x20] sm:$0xff]
    %v27 = vld [vmem:[%s0 + $0x28] sm:$0xff]
    %v28 = vld [vmem:[%s0 + $0x30] sm:$0xff]
    %v29 = vld [vmem:[%s0 + $0x38] sm:$0xff]
    %v30 = vld [vmem:[%s0 + $0x40] sm:$0xff]
    %v31 = vld [vmem:[%s0 + $0x48] sm:$0xff]
    %v32 = vld [vmem:[%s0 + $0x50] sm:$0xff]
    %v33 = vld [vmem:[%s0 + $0x58] sm:$0xff]
    %v34 = vld [vmem:[%s0 + $0x60] sm:$0xff]
    %v35 = vld [vmem:[%s0 + $0x68] sm:$0xff]
    %v36 = vld [vmem:[%s0 + $0x70] sm:$0xff]
    %v37 = vld [vmem:[%s0 + $0x78] sm:$0xff]
    %v38 = vld [vmem:[%s0 + $0x80] sm:$0xff]
    %v39 = vld [vmem:[%s0 + $0x88] sm:$0xff]
    %v40 = vld [vmem:[%s0 + $0x90] sm:$0xff]
    %v41 = vld [vmem:[%s0 + $0x98] sm:$0xff]
    %v42 = vld [vmem:[%s0 + $0xa0] sm:$0xff]
    %v43 = vld [vmem:[%s0 + $0xa8] sm:$0xff]
    %v44 = vld [vmem:[%s0 + $0xb0] sm:$0xff]
    %v45 = vld [vmem:[%s0 + $0xb8] sm:$0xff]
    %v46 = vld [vmem:[%s0 + $0xc0] sm:$0xff]
    %v47 = vld [vmem:[%s0 + $0xc8] sm:$0xff]
    %v48 = vld [vmem:[%s0 + $0xd0] sm:$0xff]
    %v49 = vld [vmem:[%s0 + $0xd8] sm:$0xff]
    %v50 = vld [vmem:[%s0 + $0xe0] sm:$0xff]
    %v51 = vld [vmem:[%s0 + $0xe8] sm:$0xff]
    %v52 = vld [vmem:[%s0 + $0xf0] sm:$0xff]
    %v53 = vld [vmem:[%s0 + $0xf8] sm:$0xff]
    %v54 = vld [vmem:[%s1] sm:$0x3]
    %v55 = vld [vmem:[%s2] sm:$0x1]
    %v56 = vpack.c.bf16 %v23, %v22
    %v57 = vpack.c.bf16 %v25, %v24
    %v58 = vpack.c.bf16 %v27, %v26
    %v59 = vpack.c.bf16 %v29, %v28
    %v60 = vpack.c.bf16 %v31, %v30
    %v61 = vpack.c.bf16 %v33, %v32
    %v62 = vpack.c.bf16 %v35, %v34
    %v63 = vpack.c.bf16 %v37, %v36
    %v64 = vpack.c.bf16 %v39, %v38
    %v65 = vpack.c.bf16 %v41, %v40
    %v66 = vpack.c.bf16 %v43, %v42
    %v67 = vpack.c.bf16 %v45, %v44
    %v68 = vpack.c.bf16 %v47, %v46
    %v69 = vpack.c.bf16 %v49, %v48
    %v70 = vpack.c.bf16 %v51, %v50
    %v71 = vpack.c.bf16 %v53, %v52
    %v73 = vlaneseq
    %v74 = vshrl.u32 %v73, 7
    %v75 = vsub.s32 0, %v74
    %v76 = vrot.slane %v55, %v75
    %vm78 = vcmask 31744
    %v80 = vsel %vm78, %v56, 0
    %v83 = vsel %vm78, %v57, 0
    %v86 = vsel %vm78, %v58, 0
    %v89 = vsel %vm78, %v59, 0
    %v92 = vsel %vm78, %v60, 0
    %v95 = vsel %vm78, %v61, 0
    %v98 = vsel %vm78, %v62, 0
    %v101 = vsel %vm78, %v63, 0
    %v104 = vsel %vm78, %v64, 0
    %v107 = vsel %vm78, %v65, 0
    %v110 = vsel %vm78, %v66, 0
    %v113 = vsel %vm78, %v67, 0
    %v116 = vsel %vm78, %v68, 0
    %v119 = vsel %vm78, %v69, 0
    %v122 = vsel %vm78, %v70, 0
    %v125 = vsel %vm78, %v71, 0
    %vm127 = vcmask 1041408
    %v129 = vsel %vm127, %v54, 0
    %131 = vmatprep.subr.bf16.mxu0 0
    %132 = vmatpush1.bf16.msra.mxu0 %v129
    %133 = vmatprep.subr.bf16.mxu0 0
    %134 = vmatpush1.bf16.msra.mxu0 0
    %135 = vmatprep.subr.bf16.mxu0 0
    %136 = vmatpush1.bf16.msra.mxu0 0
    %137 = vmatprep.subr.bf16.mxu0 0
    %138 = vmatpush1.bf16.msra.mxu0 0
    %139 = vmatprep.subr.bf16.mxu0 0
    %140 = vmatpush1.bf16.msra.mxu0 0
    %141 = vmatprep.subr.bf16.mxu0 0
    %142 = vmatpush1.bf16.msra.mxu0 0
    %143 = vmatprep.subr.bf16.mxu0 0
    %144 = vmatpush1.bf16.msra.mxu0 0
    %145 = vmatprep.subr.bf16.mxu0 0
    %146 = vmatpush1.bf16.msra.mxu0 0
    %147 = vmatprep.subr.bf16.mxu0 0
    %148 = vmatpush1.bf16.msra.mxu0 0
    %149 = vmatprep.subr.bf16.mxu0 0
    %150 = vmatpush1.bf16.msra.mxu0 0
    %151 = vmatprep.subr.bf16.mxu0 0
    %152 = vmatpush1.bf16.msra.mxu0 0
    %153 = vmatprep.subr.bf16.mxu0 0
    %154 = vmatpush1.bf16.msra.mxu0 0
    %155 = vmatprep.subr.bf16.mxu0 0
    %156 = vmatpush1.bf16.msra.mxu0 0
    %157 = vmatprep.subr.bf16.mxu0 0
    %158 = vmatpush1.bf16.msra.mxu0 0
    %159 = vmatprep.subr.bf16.mxu0 0
    %160 = vmatpush1.bf16.msra.mxu0 0
    %161 = vmatprep.subr.bf16.mxu0 0
    %162 = vmatpush1.bf16.msra.mxu0 0
    %163 = vmatprep.mubr.bf16.mxu0 0
    %164 = vmatmul.mubr.bf16.gmra.mrb[0].mxu0 %v80
    %v165 = vpop.f32.mrb[0].mxu0
    %v166 = vadd.f32 %v76, %v165
    %v167 = vpop.f32.mrb[0].mxu0
    %v168 = vpop.f32.mrb[0].mxu0
    %v169 = vadd.f32 %v76, %v168
    %v170 = vpop.f32.mrb[0].mxu0
    %171 = vmatprep.mubr.bf16.mxu0 0
    %172 = vmatmul.mubr.bf16.gmra.mrb[0].mxu0 %v83
    %v173 = vpop.f32.mrb[0].mxu0
    %v174 = vadd.f32 %v76, %v173
    %v175 = vpop.f32.mrb[0].mxu0
    %v176 = vpop.f32.mrb[0].mxu0
    %v177 = vadd.f32 %v76, %v176
    %v178 = vpop.f32.mrb[0].mxu0
    %179 = vmatprep.mubr.bf16.mxu0 0
    %180 = vmatmul.mubr.bf16.gmra.mrb[0].mxu0 %v86
    %v181 = vpop.f32.mrb[0].mxu0
    %v182 = vadd.f32 %v76, %v181
    %v183 = vpop.f32.mrb[0].mxu0
    %v184 = vpop.f32.mrb[0].mxu0
    %v185 = vadd.f32 %v76, %v184
    %v186 = vpop.f32.mrb[0].mxu0
    %187 = vmatprep.mubr.bf16.mxu0 0
    %188 = vmatmul.mubr.bf16.gmra.mrb[0].mxu0 %v89
    %v189 = vpop.f32.mrb[0].mxu0
    %v190 = vadd.f32 %v76, %v189
    %v191 = vpop.f32.mrb[0].mxu0
    %v192 = vpop.f32.mrb[0].mxu0
    %v193 = vadd.f32 %v76, %v192
    %v194 = vpop.f32.mrb[0].mxu0
    %195 = vmatprep.mubr.bf16.mxu0 0
    %196 = vmatmul.mubr.bf16.gmra.mrb[0].mxu0 %v92
    %v197 = vpop.f32.mrb[0].mxu0
    %v198 = vadd.f32 %v76, %v197
    %v199 = vpop.f32.mrb[0].mxu0
    %v200 = vpop.f32.mrb[0].mxu0
    %v201 = vadd.f32 %v76, %v200
    %v202 = vpop.f32.mrb[0].mxu0
    %203 = vmatprep.mubr.bf16.mxu0 0
    %204 = vmatmul.mubr.bf16.gmra.mrb[0].mxu0 %v95
    %v205 = vpop.f32.mrb[0].mxu0
    %v206 = vadd.f32 %v76, %v205
    %v207 = vpop.f32.mrb[0].mxu0
    %v208 = vpop.f32.mrb[0].mxu0
    %v209 = vadd.f32 %v76, %v208
    %v210 = vpop.f32.mrb[0].mxu0
    %211 = vmatprep.mubr.bf16.mxu0 0
    %212 = vmatmul.mubr.bf16.gmra.mrb[0].mxu0 %v98
    %v213 = vpop.f32.mrb[0].mxu0
    %v214 = vadd.f32 %v76, %v213
    %v215 = vpop.f32.mrb[0].mxu0
    %v216 = vpop.f32.mrb[0].mxu0
    %v217 = vadd.f32 %v76, %v216
    %v218 = vpop.f32.mrb[0].mxu0
    %219 = vmatprep.mubr.bf16.mxu0 0
    %220 = vmatmul.mubr.bf16.gmra.mrb[0].mxu0 %v101
    %v221 = vpop.f32.mrb[0].mxu0
    %v222 = vadd.f32 %v76, %v221
    %v223 = vpop.f32.mrb[0].mxu0
    %v224 = vpop.f32.mrb[0].mxu0
    %v225 = vadd.f32 %v76, %v224
    %v226 = vpop.f32.mrb[0].mxu0
    %227 = vmatprep.mubr.bf16.mxu0 0
    %228 = vmatmul.mubr.bf16.gmra.mrb[0].mxu0 %v104
    %v229 = vpop.f32.mrb[0].mxu0
    %v230 = vadd.f32 %v76, %v229
    %v231 = vpop.f32.mrb[0].mxu0
    %v232 = vpop.f32.mrb[0].mxu0
    %v233 = vadd.f32 %v76, %v232
    %v234 = vpop.f32.mrb[0].mxu0
    %235 = vmatprep.mubr.bf16.mxu0 0
    %236 = vmatmul.mubr.bf16.gmra.mrb[0].mxu0 %v107
    %v237 = vpop.f32.mrb[0].mxu0
    %v238 = vadd.f32 %v76, %v237
    %v239 = vpop.f32.mrb[0].mxu0
    %v240 = vpop.f32.mrb[0].mxu0
    %v241 = vadd.f32 %v76, %v240
    %v242 = vpop.f32.mrb[0].mxu0
    %243 = vmatprep.mubr.bf16.mxu0 0
    %244 = vmatmul.mubr.bf16.gmra.mrb[0].mxu0 %v110
    %v245 = vpop.f32.mrb[0].mxu0
    %v246 = vadd.f32 %v76, %v245
    %v247 = vpop.f32.mrb[0].mxu0
    %v248 = vpop.f32.mrb[0].mxu0
    %v249 = vadd.f32 %v76, %v248
    %v250 = vpop.f32.mrb[0].mxu0
    %251 = vmatprep.mubr.bf16.mxu0 0
    %252 = vmatmul.mubr.bf16.gmra.mrb[0].mxu0 %v113
    %v253 = vpop.f32.mrb[0].mxu0
    %v254 = vadd.f32 %v76, %v253
    %v255 = vpop.f32.mrb[0].mxu0
    %v256 = vpop.f32.mrb[0].mxu0
    %v257 = vadd.f32 %v76, %v256
    %v258 = vpop.f32.mrb[0].mxu0
    %259 = vmatprep.mubr.bf16.mxu0 0
    %260 = vmatmul.mubr.bf16.gmra.mrb[0].mxu0 %v116
    %v261 = vpop.f32.mrb[0].mxu0
    %v262 = vadd.f32 %v76, %v261
    %v263 = vpop.f32.mrb[0].mxu0
    %v264 = vpop.f32.mrb[0].mxu0
    %v265 = vadd.f32 %v76, %v264
    %v266 = vpop.f32.mrb[0].mxu0
    %267 = vmatprep.mubr.bf16.mxu0 0
    %268 = vmatmul.mubr.bf16.gmra.mrb[0].mxu0 %v119
    %v269 = vpop.f32.mrb[0].mxu0
    %v270 = vadd.f32 %v76, %v269
    %v271 = vpop.f32.mrb[0].mxu0
    %v272 = vpop.f32.mrb[0].mxu0
    %v273 = vadd.f32 %v76, %v272
    %v274 = vpop.f32.mrb[0].mxu0
    %275 = vmatprep.mubr.bf16.mxu0 0
    %276 = vmatmul.mubr.bf16.gmra.mrb[0].mxu0 %v122
    %v277 = vpop.f32.mrb[0].mxu0
    %v278 = vadd.f32 %v76, %v277
    %v279 = vpop.f32.mrb[0].mxu0
    %v280 = vpop.f32.mrb[0].mxu0
    %v281 = vadd.f32 %v76, %v280
    %v282 = vpop.f32.mrb[0].mxu0
    %283 = vmatprep.mubr.bf16.mxu0 0
    %284 = vmatmul.mubr.bf16.gmra.mrb[0].mxu0 %v125
    %v285 = vpop.f32.mrb[0].mxu0
    %v286 = vadd.f32 %v76, %v285
    %v287 = vpop.f32.mrb[0].mxu0
    %v288 = vpop.f32.mrb[0].mxu0
    %v289 = vadd.f32 %v76, %v288
    %v290 = vpop.f32.mrb[0].mxu0
    %291 = vdwg.mxu0
    %v292 = vmax.f32 %v166, 0.0
    %v293 = vmax.f32 %v169, 0.0
    %v294 = vmax.f32 %v174, 0.0
    %v295 = vmax.f32 %v177, 0.0
    %v296 = vmax.f32 %v182, 0.0
    %v297 = vmax.f32 %v185, 0.0
    %v298 = vmax.f32 %v190, 0.0
    %v299 = vmax.f32 %v193, 0.0
    %v300 = vmax.f32 %v198, 0.0
    %v301 = vmax.f32 %v201, 0.0
    %v302 = vmax.f32 %v206, 0.0
    %v303 = vmax.f32 %v209, 0.0
    %v304 = vmax.f32 %v214, 0.0
    %v305 = vmax.f32 %v217, 0.0
    %v306 = vmax.f32 %v222, 0.0
    %v307 = vmax.f32 %v225, 0.0
    %v308 = vmax.f32 %v230, 0.0
    %v309 = vmax.f32 %v233, 0.0
    %v310 = vmax.f32 %v238, 0.0
    %v311 = vmax.f32 %v241, 0.0
    %v312 = vmax.f32 %v246, 0.0
    %v313 = vmax.f32 %v249, 0.0
    %v314 = vmax.f32 %v254, 0.0
    %v315 = vmax.f32 %v257, 0.0
    %v316 = vmax.f32 %v262, 0.0
    %v317 = vmax.f32 %v265, 0.0
    %v318 = vmax.f32 %v270, 0.0
    %v319 = vmax.f32 %v273, 0.0
    %v320 = vmax.f32 %v278, 0.0
    %v321 = vmax.f32 %v281, 0.0
    %v322 = vmax.f32 %v286, 0.0
    %v323 = vmax.f32 %v289, 0.0
    %v324 = vld [vmem:[%s3] sm:$0xf]
    %v325 = vld [vmem:[%s3 + $0x4] sm:$0xf]
    %v326 = vld [vmem:[%s3 + $0x8] sm:$0xf]
    %v327 = vld [vmem:[%s3 + $0xc] sm:$0xf]
    %v328 = vld [vmem:[%s4] sm:$0x1]
    %v329 = vpack.c.bf16 %v293, %v292
    %v330 = vpack.c.bf16 %v295, %v294
    %v331 = vpack.c.bf16 %v297, %v296
    %v332 = vpack.c.bf16 %v299, %v298
    %v333 = vpack.c.bf16 %v301, %v300
    %v334 = vpack.c.bf16 %v303, %v302
    %v335 = vpack.c.bf16 %v305, %v304
    %v336 = vpack.c.bf16 %v307, %v306
    %v337 = vpack.c.bf16 %v309, %v308
    %v338 = vpack.c.bf16 %v311, %v310
    %v339 = vpack.c.bf16 %v313, %v312
    %v340 = vpack.c.bf16 %v315, %v314
    %v341 = vpack.c.bf16 %v317, %v316
    %v342 = vpack.c.bf16 %v319, %v318
    %v343 = vpack.c.bf16 %v321, %v320
    %v344 = vpack.c.bf16 %v323, %v322
    %v346 = vlaneseq
    %v347 = vshrl.u32 %v346, 7
    %v348 = vsub.s32 0, %v347
    %v349 = vrot.slane %v328, %v348
    %v355 = vunpack.c.l.b16 %v324
    %v356 = vunpack.c.l.b16 %v325
    %v357 = vunpack.c.l.b16 %v326
    %v358 = vunpack.c.l.b16 %v327
    %v359 = vpack.c.b16 %v356, %v355
    %v360 = vpack.c.b16 %v358, %v357
    %vm363 = vcmask 261120
    %v365 = vsel %vm363, %v329, 0
    %v368 = vsel %vm363, %v330, 0
    %v371 = vsel %vm363, %v331, 0
    %v374 = vsel %vm363, %v332, 0
    %v377 = vsel %vm363, %v333, 0
    %v380 = vsel %vm363, %v334, 0
    %v383 = vsel %vm363, %v335, 0
    %v386 = vsel %vm363, %v336, 0
    %v389 = vsel %vm363, %v337, 0
    %v392 = vsel %vm363, %v338, 0
    %v395 = vsel %vm363, %v339, 0
    %v398 = vsel %vm363, %v340, 0
    %v401 = vsel %vm363, %v341, 0
    %v404 = vsel %vm363, %v342, 0
    %v407 = vsel %vm363, %v343, 0
    %v410 = vsel %vm363, %v344, 0
    %412 = vmatprep.subr.bf16.mxu0 0
    %413 = vmatpush1.bf16.msra.mxu0 %v359
    %414 = vmatprep.subr.bf16.mxu0 0
    %415 = vmatpush1.bf16.msra.mxu0 %v360
    %416 = vmatprep.subr.bf16.mxu0 0
    %417 = vmatpush1.bf16.msra.mxu0 0
    %418 = vmatprep.subr.bf16.mxu0 0
    %419 = vmatpush1.bf16.msra.mxu0 0
    %420 = vmatprep.subr.bf16.mxu0 0
    %421 = vmatpush1.bf16.msra.mxu0 0
    %422 = vmatprep.subr.bf16.mxu0 0
    %423 = vmatpush1.bf16.msra.mxu0 0
    %424 = vmatprep.subr.bf16.mxu0 0
    %425 = vmatpush1.bf16.msra.mxu0 0
    %426 = vmatprep.subr.bf16.mxu0 0
    %427 = vmatpush1.bf16.msra.mxu0 0
    %428 = vmatprep.subr.bf16.mxu0 0
    %429 = vmatpush1.bf16.msra.mxu0 0
    %430 = vmatprep.subr.bf16.mxu0 0
    %431 = vmatpush1.bf16.msra.mxu0 0
    %432 = vmatprep.subr.bf16.mxu0 0
    %433 = vmatpush1.bf16.msra.mxu0 0
    %434 = vmatprep.subr.bf16.mxu0 0
    %435 = vmatpush1.bf16.msra.mxu0 0
    %436 = vmatprep.subr.bf16.mxu0 0
    %437 = vmatpush1.bf16.msra.mxu0 0
    %438 = vmatprep.subr.bf16.mxu0 0
    %439 = vmatpush1.bf16.msra.mxu0 0
    %440 = vmatprep.subr.bf16.mxu0 0
    %441 = vmatpush1.bf16.msra.mxu0 0
    %442 = vmatprep.subr.bf16.mxu0 0
    %443 = vmatpush1.bf16.msra.mxu0 0
    %444 = vmatprep.mubr.bf16.mxu0 0
    %445 = vmatmul.mubr.bf16.gmra.mrb[0].mxu0 %v365
    %v446 = vpop.f32.mrb[0].mxu0
    %v447 = vadd.f32 %v349, %v446
    %v448 = vpop.f32.mrb[0].mxu0
    %v449 = vpop.f32.mrb[0].mxu0
    %v450 = vadd.f32 %v349, %v449
    %v451 = vpop.f32.mrb[0].mxu0
    %452 = vmatprep.mubr.bf16.mxu0 0
    %453 = vmatmul.mubr.bf16.gmra.mrb[0].mxu0 %v368
    %v454 = vpop.f32.mrb[0].mxu0
    %v455 = vadd.f32 %v349, %v454
    %v456 = vpop.f32.mrb[0].mxu0
    %v457 = vpop.f32.mrb[0].mxu0
    %v458 = vadd.f32 %v349, %v457
    %v459 = vpop.f32.mrb[0].mxu0
    %460 = vmatprep.mubr.bf16.mxu0 0
    %461 = vmatmul.mubr.bf16.gmra.mrb[0].mxu0 %v371
    %v462 = vpop.f32.mrb[0].mxu0
    %v463 = vadd.f32 %v349, %v462
    %v464 = vpop.f32.mrb[0].mxu0
    %v465 = vpop.f32.mrb[0].mxu0
    %v466 = vadd.f32 %v349, %v465
    %v467 = vpop.f32.mrb[0].mxu0
    %468 = vmatprep.mubr.bf16.mxu0 0
    %469 = vmatmul.mubr.bf16.gmra.mrb[0].mxu0 %v374
    %v470 = vpop.f32.mrb[0].mxu0
    %v471 = vadd.f32 %v349, %v470
    %v472 = vpop.f32.mrb[0].mxu0
    %v473 = vpop.f32.mrb[0].mxu0
    %v474 = vadd.f32 %v349, %v473
    %v475 = vpop.f32.mrb[0].mxu0
    %476 = vmatprep.mubr.bf16.mxu0 0
    %477 = vmatmul.mubr.bf16.gmra.mrb[0].mxu0 %v377
    %v478 = vpop.f32.mrb[0].mxu0
    %v479 = vadd.f32 %v349, %v478
    %v480 = vpop.f32.mrb[0].mxu0
    %v481 = vpop.f32.mrb[0].mxu0
    %v482 = vadd.f32 %v349, %v481
    %v483 = vpop.f32.mrb[0].mxu0
    %484 = vmatprep.mubr.bf16.mxu0 0
    %485 = vmatmul.mubr.bf16.gmra.mrb[0].mxu0 %v380
    %v486 = vpop.f32.mrb[0].mxu0
    %v487 = vadd.f32 %v349, %v486
    %v488 = vpop.f32.mrb[0].mxu0
    %v489 = vpop.f32.mrb[0].mxu0
    %v490 = vadd.f32 %v349, %v489
    %v491 = vpop.f32.mrb[0].mxu0
    %492 = vmatprep.mubr.bf16.mxu0 0
    %493 = vmatmul.mubr.bf16.gmra.mrb[0].mxu0 %v383
    %v494 = vpop.f32.mrb[0].mxu0
    %v495 = vadd.f32 %v349, %v494
    %v496 = vpop.f32.mrb[0].mxu0
    %v497 = vpop.f32.mrb[0].mxu0
    %v498 = vadd.f32 %v349, %v497
    %v499 = vpop.f32.mrb[0].mxu0
    %500 = vmatprep.mubr.bf16.mxu0 0
    %501 = vmatmul.mubr.bf16.gmra.mrb[0].mxu0 %v386
    %v502 = vpop.f32.mrb[0].mxu0
    %v503 = vadd.f32 %v349, %v502
    %v504 = vpop.f32.mrb[0].mxu0
    %v505 = vpop.f32.mrb[0].mxu0
    %v506 = vadd.f32 %v349, %v505
    %v507 = vpop.f32.mrb[0].mxu0
    %508 = vmatprep.mubr.bf16.mxu0 0
    %509 = vmatmul.mubr.bf16.gmra.mrb[0].mxu0 %v389
    %v510 = vpop.f32.mrb[0].mxu0
    %v511 = vadd.f32 %v349, %v510
    %v512 = vpop.f32.mrb[0].mxu0
    %v513 = vpop.f32.mrb[0].mxu0
    %v514 = vadd.f32 %v349, %v513
    %v515 = vpop.f32.mrb[0].mxu0
    %516 = vmatprep.mubr.bf16.mxu0 0
    %517 = vmatmul.mubr.bf16.gmra.mrb[0].mxu0 %v392
    %v518 = vpop.f32.mrb[0].mxu0
    %v519 = vadd.f32 %v349, %v518
    %v520 = vpop.f32.mrb[0].mxu0
    %v521 = vpop.f32.mrb[0].mxu0
    %v522 = vadd.f32 %v349, %v521
    %v523 = vpop.f32.mrb[0].mxu0
    %524 = vmatprep.mubr.bf16.mxu0 0
    %525 = vmatmul.mubr.bf16.gmra.mrb[0].mxu0 %v395
    %v526 = vpop.f32.mrb[0].mxu0
    %v527 = vadd.f32 %v349, %v526
    %v528 = vpop.f32.mrb[0].mxu0
    %v529 = vpop.f32.mrb[0].mxu0
    %v530 = vadd.f32 %v349, %v529
    %v531 = vpop.f32.mrb[0].mxu0
    %532 = vmatprep.mubr.bf16.mxu0 0
    %533 = vmatmul.mubr.bf16.gmra.mrb[0].mxu0 %v398
    %v534 = vpop.f32.mrb[0].mxu0
    %v535 = vadd.f32 %v349, %v534
    %v536 = vpop.f32.mrb[0].mxu0
    %v537 = vpop.f32.mrb[0].mxu0
    %v538 = vadd.f32 %v349, %v537
    %v539 = vpop.f32.mrb[0].mxu0
    %540 = vmatprep.mubr.bf16.mxu0 0
    %541 = vmatmul.mubr.bf16.gmra.mrb[0].mxu0 %v401
    %v542 = vpop.f32.mrb[0].mxu0
    %v543 = vadd.f32 %v349, %v542
    %v544 = vpop.f32.mrb[0].mxu0
    %v545 = vpop.f32.mrb[0].mxu0
    %v546 = vadd.f32 %v349, %v545
    %v547 = vpop.f32.mrb[0].mxu0
    %548 = vmatprep.mubr.bf16.mxu0 0
    %549 = vmatmul.mubr.bf16.gmra.mrb[0].mxu0 %v404
    %v550 = vpop.f32.mrb[0].mxu0
    %v551 = vadd.f32 %v349, %v550
    %v552 = vpop.f32.mrb[0].mxu0
    %v553 = vpop.f32.mrb[0].mxu0
    %v554 = vadd.f32 %v349, %v553
    %v555 = vpop.f32.mrb[0].mxu0
    %556 = vmatprep.mubr.bf16.mxu0 0
    %557 = vmatmul.mubr.bf16.gmra.mrb[0].mxu0 %v407
    %v558 = vpop.f32.mrb[0].mxu0
    %v559 = vadd.f32 %v349, %v558
    %v560 = vpop.f32.mrb[0].mxu0
    %v561 = vpop.f32.mrb[0].mxu0
    %v562 = vadd.f32 %v349, %v561
    %v563 = vpop.f32.mrb[0].mxu0
    %564 = vmatprep.mubr.bf16.mxu0 0
    %565 = vmatmul.mubr.bf16.gmra.mrb[0].mxu0 %v410
    %v566 = vpop.f32.mrb[0].mxu0
    %v567 = vadd.f32 %v349, %v566
    %v568 = vpop.f32.mrb[0].mxu0
    %v569 = vpop.f32.mrb[0].mxu0
    %v570 = vadd.f32 %v349, %v569
    %v571 = vpop.f32.mrb[0].mxu0
    %572 = vdwg.mxu0
    %v573 = vmax.f32 %v447, 0.0
    %v574 = vmax.f32 %v450, 0.0
    %v575 = vmax.f32 %v455, 0.0
    %v576 = vmax.f32 %v458, 0.0
    %v577 = vmax.f32 %v463, 0.0
    %v578 = vmax.f32 %v466, 0.0
    %v579 = vmax.f32 %v471, 0.0
    %v580 = vmax.f32 %v474, 0.0
    %v581 = vmax.f32 %v479, 0.0
    %v582 = vmax.f32 %v482, 0.0
    %v583 = vmax.f32 %v487, 0.0
    %v584 = vmax.f32 %v490, 0.0
    %v585 = vmax.f32 %v495, 0.0
    %v586 = vmax.f32 %v498, 0.0
    %v587 = vmax.f32 %v503, 0.0
    %v588 = vmax.f32 %v506, 0.0
    %v589 = vmax.f32 %v511, 0.0
    %v590 = vmax.f32 %v514, 0.0
    %v591 = vmax.f32 %v519, 0.0
    %v592 = vmax.f32 %v522, 0.0
    %v593 = vmax.f32 %v527, 0.0
    %v594 = vmax.f32 %v530, 0.0
    %v595 = vmax.f32 %v535, 0.0
    %v596 = vmax.f32 %v538, 0.0
    %v597 = vmax.f32 %v543, 0.0
    %v598 = vmax.f32 %v546, 0.0
    %v599 = vmax.f32 %v551, 0.0
    %v600 = vmax.f32 %v554, 0.0
    %v601 = vmax.f32 %v559, 0.0
    %v602 = vmax.f32 %v562, 0.0
    %v603 = vmax.f32 %v567, 0.0
    %v604 = vmax.f32 %v570, 0.0
    %v605 = vsel %vm363, %v573, -inf
    %v606 = vrot.slane %v605, 4
    %v607 = vmax.f32 %v605, %v606
    %v608 = vrot.slane %v607, 2
    %v609 = vmax.f32 %v607, %v608
    %v610 = vrot.slane %v609, 1
    %v611 = vmax.f32 %v609, %v610
    %v612 = vsel %vm363, %v574, -inf
    %v613 = vrot.slane %v612, 4
    %v614 = vmax.f32 %v612, %v613
    %v615 = vrot.slane %v614, 2
    %v616 = vmax.f32 %v614, %v615
    %v617 = vrot.slane %v616, 1
    %v618 = vmax.f32 %v616, %v617
    %v619 = vsel %vm363, %v575, -inf
    %v620 = vrot.slane %v619, 4
    %v621 = vmax.f32 %v619, %v620
    %v622 = vrot.slane %v621, 2
    %v623 = vmax.f32 %v621, %v622
    %v624 = vrot.slane %v623, 1
    %v625 = vmax.f32 %v623, %v624
    %v626 = vsel %vm363, %v576, -inf
    %v627 = vrot.slane %v626, 4
    %v628 = vmax.f32 %v626, %v627
    %v629 = vrot.slane %v628, 2
    %v630 = vmax.f32 %v628, %v629
    %v631 = vrot.slane %v630, 1
    %v632 = vmax.f32 %v630, %v631
    %v633 = vsel %vm363, %v577, -inf
    %v634 = vrot.slane %v633, 4
    %v635 = vmax.f32 %v633, %v634
    %v636 = vrot.slane %v635, 2
    %v637 = vmax.f32 %v635, %v636
    %v638 = vrot.slane %v637, 1
    %v639 = vmax.f32 %v637, %v638
    %v640 = vsel %vm363, %v578, -inf
    %v641 = vrot.slane %v640, 4
    %v642 = vmax.f32 %v640, %v641
    %v643 = vrot.slane %v642, 2
    %v644 = vmax.f32 %v642, %v643
    %v645 = vrot.slane %v644, 1
    %v646 = vmax.f32 %v644, %v645
    %v647 = vsel %vm363, %v579, -inf
    %v648 = vrot.slane %v647, 4
    %v649 = vmax.f32 %v647, %v648
    %v650 = vrot.slane %v649, 2
    %v651 = vmax.f32 %v649, %v650
    %v652 = vrot.slane %v651, 1
    %v653 = vmax.f32 %v651, %v652
    %v654 = vsel %vm363, %v580, -inf
    %v655 = vrot.slane %v654, 4
    %v656 = vmax.f32 %v654, %v655
    %v657 = vrot.slane %v656, 2
    %v658 = vmax.f32 %v656, %v657
    %v659 = vrot.slane %v658, 1
    %v660 = vmax.f32 %v658, %v659
    %v661 = vsel %vm363, %v581, -inf
    %v662 = vrot.slane %v661, 4
    %v663 = vmax.f32 %v661, %v662
    %v664 = vrot.slane %v663, 2
    %v665 = vmax.f32 %v663, %v664
    %v666 = vrot.slane %v665, 1
    %v667 = vmax.f32 %v665, %v666
    %v668 = vsel %vm363, %v582, -inf
    %v669 = vrot.slane %v668, 4
    %v670 = vmax.f32 %v668, %v669
    %v671 = vrot.slane %v670, 2
    %v672 = vmax.f32 %v670, %v671
    %v673 = vrot.slane %v672, 1
    %v674 = vmax.f32 %v672, %v673
    %v675 = vsel %vm363, %v583, -inf
    %v676 = vrot.slane %v675, 4
    %v677 = vmax.f32 %v675, %v676
    %v678 = vrot.slane %v677, 2
    %v679 = vmax.f32 %v677, %v678
    %v680 = vrot.slane %v679, 1
    %v681 = vmax.f32 %v679, %v680
    %v682 = vsel %vm363, %v584, -inf
    %v683 = vrot.slane %v682, 4
    %v684 = vmax.f32 %v682, %v683
    %v685 = vrot.slane %v684, 2
    %v686 = vmax.f32 %v684, %v685
    %v687 = vrot.slane %v686, 1
    %v688 = vmax.f32 %v686, %v687
    %v689 = vsel %vm363, %v585, -inf
    %v690 = vrot.slane %v689, 4
    %v691 = vmax.f32 %v689, %v690
    %v692 = vrot.slane %v691, 2
    %v693 = vmax.f32 %v691, %v692
    %v694 = vrot.slane %v693, 1
    %v695 = vmax.f32 %v693, %v694
    %v696 = vsel %vm363, %v586, -inf
    %v697 = vrot.slane %v696, 4
    %v698 = vmax.f32 %v696, %v697
    %v699 = vrot.slane %v698, 2
    %v700 = vmax.f32 %v698, %v699
    %v701 = vrot.slane %v700, 1
    %v702 = vmax.f32 %v700, %v701
    %v703 = vsel %vm363, %v587, -inf
    %v704 = vrot.slane %v703, 4
    %v705 = vmax.f32 %v703, %v704
    %v706 = vrot.slane %v705, 2
    %v707 = vmax.f32 %v705, %v706
    %v708 = vrot.slane %v707, 1
    %v709 = vmax.f32 %v707, %v708
    %v710 = vsel %vm363, %v588, -inf
    %v711 = vrot.slane %v710, 4
    %v712 = vmax.f32 %v710, %v711
    %v713 = vrot.slane %v712, 2
    %v714 = vmax.f32 %v712, %v713
    %v715 = vrot.slane %v714, 1
    %v716 = vmax.f32 %v714, %v715
    %v717 = vsel %vm363, %v589, -inf
    %v718 = vrot.slane %v717, 4
    %v719 = vmax.f32 %v717, %v718
    %v720 = vrot.slane %v719, 2
    %v721 = vmax.f32 %v719, %v720
    %v722 = vrot.slane %v721, 1
    %v723 = vmax.f32 %v721, %v722
    %v724 = vsel %vm363, %v590, -inf
    %v725 = vrot.slane %v724, 4
    %v726 = vmax.f32 %v724, %v725
    %v727 = vrot.slane %v726, 2
    %v728 = vmax.f32 %v726, %v727
    %v729 = vrot.slane %v728, 1
    %v730 = vmax.f32 %v728, %v729
    %v731 = vsel %vm363, %v591, -inf
    %v732 = vrot.slane %v731, 4
    %v733 = vmax.f32 %v731, %v732
    %v734 = vrot.slane %v733, 2
    %v735 = vmax.f32 %v733, %v734
    %v736 = vrot.slane %v735, 1
    %v737 = vmax.f32 %v735, %v736
    %v738 = vsel %vm363, %v592, -inf
    %v739 = vrot.slane %v738, 4
    %v740 = vmax.f32 %v738, %v739
    %v741 = vrot.slane %v740, 2
    %v742 = vmax.f32 %v740, %v741
    %v743 = vrot.slane %v742, 1
    %v744 = vmax.f32 %v742, %v743
    %v745 = vsel %vm363, %v593, -inf
    %v746 = vrot.slane %v745, 4
    %v747 = vmax.f32 %v745, %v746
    %v748 = vrot.slane %v747, 2
    %v749 = vmax.f32 %v747, %v748
    %v750 = vrot.slane %v749, 1
    %v751 = vmax.f32 %v749, %v750
    %v752 = vsel %vm363, %v594, -inf
    %v753 = vrot.slane %v752, 4
    %v754 = vmax.f32 %v752, %v753
    %v755 = vrot.slane %v754, 2
    %v756 = vmax.f32 %v754, %v755
    %v757 = vrot.slane %v756, 1
    %v758 = vmax.f32 %v756, %v757
    %v759 = vsel %vm363, %v595, -inf
    %v760 = vrot.slane %v759, 4
    %v761 = vmax.f32 %v759, %v760
    %v762 = vrot.slane %v761, 2
    %v763 = vmax.f32 %v761, %v762
    %v764 = vrot.slane %v763, 1
    %v765 = vmax.f32 %v763, %v764
    %v766 = vsel %vm363, %v596, -inf
    %v767 = vrot.slane %v766, 4
    %v768 = vmax.f32 %v766, %v767
    %v769 = vrot.slane %v768, 2
    %v770 = vmax.f32 %v768, %v769
    %v771 = vrot.slane %v770, 1
    %v772 = vmax.f32 %v770, %v771
    %v773 = vsel %vm363, %v597, -inf
    %v774 = vrot.slane %v773, 4
    %v775 = vmax.f32 %v773, %v774
    %v776 = vrot.slane %v775, 2
    %v777 = vmax.f32 %v775, %v776
    %v778 = vrot.slane %v777, 1
    %v779 = vmax.f32 %v777, %v778
    %v780 = vsel %vm363, %v598, -inf
    %v781 = vrot.slane %v780, 4
    %v782 = vmax.f32 %v780, %v781
    %v783 = vrot.slane %v782, 2
    %v784 = vmax.f32 %v782, %v783
    %v785 = vrot.slane %v784, 1
    %v786 = vmax.f32 %v784, %v785
    %v787 = vsel %vm363, %v599, -inf
    %v788 = vrot.slane %v787, 4
    %v789 = vmax.f32 %v787, %v788
    %v790 = vrot.slane %v789, 2
    %v791 = vmax.f32 %v789, %v790
    %v792 = vrot.slane %v791, 1
    %v793 = vmax.f32 %v791, %v792
    %v794 = vsel %vm363, %v600, -inf
    %v795 = vrot.slane %v794, 4
    %v796 = vmax.f32 %v794, %v795
    %v797 = vrot.slane %v796, 2
    %v798 = vmax.f32 %v796, %v797
    %v799 = vrot.slane %v798, 1
    %v800 = vmax.f32 %v798, %v799
    %v801 = vsel %vm363, %v601, -inf
    %v802 = vrot.slane %v801, 4
    %v803 = vmax.f32 %v801, %v802
    %v804 = vrot.slane %v803, 2
    %v805 = vmax.f32 %v803, %v804
    %v806 = vrot.slane %v805, 1
    %v807 = vmax.f32 %v805, %v806
    %v808 = vsel %vm363, %v602, -inf
    %v809 = vrot.slane %v808, 4
    %v810 = vmax.f32 %v808, %v809
    %v811 = vrot.slane %v810, 2
    %v812 = vmax.f32 %v810, %v811
    %v813 = vrot.slane %v812, 1
    %v814 = vmax.f32 %v812, %v813
    %v815 = vsel %vm363, %v603, -inf
    %v816 = vrot.slane %v815, 4
    %v817 = vmax.f32 %v815, %v816
    %v818 = vrot.slane %v817, 2
    %v819 = vmax.f32 %v817, %v818
    %v820 = vrot.slane %v819, 1
    %v821 = vmax.f32 %v819, %v820
    %v822 = vsel %vm363, %v604, -inf
    %v823 = vrot.slane %v822, 4
    %v824 = vmax.f32 %v822, %v823
    %v825 = vrot.slane %v824, 2
    %v826 = vmax.f32 %v824, %v825
    %v827 = vrot.slane %v826, 1
    %v828 = vmax.f32 %v826, %v827
    %vm861 = vcmask 1041409
    %v862 = vsel %vm861, %v618, %v611
    %vm863 = vcmask 1042434
    %v864 = vsel %vm863, %v625, %v862
    %vm865 = vcmask 1043459
    %v866 = vsel %vm865, %v632, %v864
    %vm867 = vcmask 1044484
    %v868 = vsel %vm867, %v639, %v866
    %vm869 = vcmask 1045509
    %v870 = vsel %vm869, %v646, %v868
    %vm871 = vcmask 1046534
    %v872 = vsel %vm871, %v653, %v870
    %vm873 = vcmask 1047559
    %v874 = vsel %vm873, %v660, %v872
    %v875 = vsel %vm861, %v674, %v667
    %v876 = vsel %vm863, %v681, %v875
    %v877 = vsel %vm865, %v688, %v876
    %v878 = vsel %vm867, %v695, %v877
    %v879 = vsel %vm869, %v702, %v878
    %v880 = vsel %vm871, %v709, %v879
    %v881 = vsel %vm873, %v716, %v880
    %v882 = vsel %vm861, %v730, %v723
    %v883 = vsel %vm863, %v737, %v882
    %v884 = vsel %vm865, %v744, %v883
    %v885 = vsel %vm867, %v751, %v884
    %v886 = vsel %vm869, %v758, %v885
    %v887 = vsel %vm871, %v765, %v886
    %v888 = vsel %vm873, %v772, %v887
    %v889 = vsel %vm861, %v786, %v779
    %v890 = vsel %vm863, %v793, %v889
    %v891 = vsel %vm865, %v800, %v890
    %v892 = vsel %vm867, %v807, %v891
    %v893 = vsel %vm869, %v814, %v892
    %v894 = vsel %vm871, %v821, %v893
    %v895 = vsel %vm873, %v828, %v894
    %900 = vst.msk [vmem:[#allocation2] sm:$0xff] %vm363, %v874
    %901 = vst.msk [vmem:[#allocation2 + $0x8] sm:$0xff] %vm363, %v881
    %902 = vst.msk [vmem:[#allocation2 + $0x10] sm:$0xff] %vm363, %v888
    %903 = vst.msk [vmem:[#allocation2 + $0x18] sm:$0xff] %vm363, %v895
    // Predicated region
    $region22: #{tpu_custom_call.1} parent=1 // pred_check
      _
    $region23: #{tpu_custom_call.1} parent=1 // pred_check_branch
      %905 = sbr.rel (0) target = $region25
    $region24: #{tpu_custom_call.1} parent=1 // pred_region
      %s907 = ssub.s32 512, 512
      %908 = vsyncadd [#allocation3], %s907
      %s909 = sshll.u32 [#allocation2], 4
      %s910 = int_to_ptr.vmem [resolvable:$true] %s909
      %915 = dma.vmem_to_hbm [thread:$0]  %s910, 512, %s5, [#allocation3], 128, 128, 8
    $region25: #{tpu_custom_call.1} parent=1 // pred_fallthru
      _
    // Predicated region
    $region26: #{tpu_custom_call.1} parent=1 // pred_check
      _
    $region27: #{tpu_custom_call.1} parent=1 // pred_check_branch
      %917 = sbr.rel (0) target = $region29
    $region28: #{tpu_custom_call.1} parent=1 // pred_region
      %918 = dma.done [#allocation3], 512
    $region29: #{tpu_custom_call.1} parent=1 // pred_fallthru
      _
    %919 = vsyncpa [#allocation3], 1

</llo_original>
